<compile_context>
chip_gen: v5e
topology: v5e:2x2
jax: 0.10.0
libtpu: 0.0.40
codegen_flags: <defaults>
</compile_context>

<pallas_src>
import functools

import jax
import jax.numpy as jnp
from jax.experimental import pallas as pl
from jax.experimental.pallas import tpu as pltpu


def _round_up(x, m):
    return ((x + m - 1) // m) * m


def _approx_gelu_proj_kernel(x_ref, w_ref, b_ref, o_ref, acc_ref, *, cast_to_bf16):
    # x_ref: (tile_m, tile_k), w_ref: (tile_k, tile_n), b_ref: (1, tile_n)
    # o_ref: (tile_m, tile_n), acc_ref: f32 (tile_m, tile_n) scratch
    k = pl.program_id(2)

    @pl.when(k == 0)
    def _():
        # Fold the bias into the accumulator init: removes a full-tile f32 add +
        # broadcast from the critical last-K epilogue.
        acc_ref[...] = jnp.broadcast_to(
            b_ref[...].astype(jnp.float32), acc_ref.shape
        )

    xt = x_ref[...]
    wt = w_ref[...]
    if cast_to_bf16:
        xt = xt.astype(jnp.bfloat16)
        wt = wt.astype(jnp.bfloat16)
    acc_ref[...] += jnp.dot(xt, wt, preferred_element_type=jnp.float32)

    @pl.when(k == pl.num_programs(2) - 1)
    def _():
        y = acc_ref[...]
        # Approximate GELU: y * sigmoid(1.702 * y); exp + approximate reciprocal
        # both run on the EUP slot, essentially free next to the MXU work.
        sig = pl.reciprocal(1.0 + jnp.exp(-1.702 * y), approx=True)
        o_ref[...] = (y * sig).astype(o_ref.dtype)


def approximate_gelu(
    x, weight, bias, *, tile_m=512, tile_n=512, tile_k=1024, cast_to_bf16=False
):
    """x: (B, S, dim_in); weight: (dim_in, dim_out); bias: (dim_out,).

    Returns (B, S, dim_out) with ApproximateGELU forward semantics.
    """
    B, S, dim_in = x.shape
    dim_out = weight.shape[1]
    M = B * S

    x_isz = jnp.dtype(x.dtype).itemsize
    w_isz = jnp.dtype(weight.dtype).itemsize
    # Sublane alignment: 8 rows for 4-byte dtypes, 16 for bf16 (2 rows per sublane).
    m_align = max(8, 32 // x_isz)

    # --- M tiling: full-extent block if it fits (legal for any M), else an aligned
    # tile with a partial edge block. No wrapper padding.
    if M <= tile_m:
        tile_m = M
    else:
        tile_m = max(m_align, (tile_m // m_align) * m_align)

    # --- N tiling: full-extent block if it fits, else a lane-dense multiple-of-128
    # tile with a partial edge block. No wrapper padding / output slice.
    if dim_out <= tile_n:
        tile_n = dim_out
    else:
        tile_n = max(128, (tile_n // 128) * 128)

    # If the parallel (i, j) grid would be 1x1, split M (preferred) or N so both
    # v7x TensorCores get work.
    if pl.cdiv(M, tile_m) * pl.cdiv(dim_out, tile_n) == 1:
        if M > m_align:
            tile_m = _round_up(pl.cdiv(M, 2), m_align)
        elif dim_out > 128:
            tile_n = _round_up(pl.cdiv(dim_out, 2), 128)

    # --- K tiling: must be exact (garbage in a K overhang would enter the sum).
    # Common case: one full-extent K block (no padding, no extra copies). Otherwise
    # pad K to a multiple of 128 and pick the largest 128-multiple tile dividing it.
    if dim_in <= tile_k:
        tile_k = dim_in
        Kp = dim_in
    else:
        Kp = _round_up(dim_in, 128)
        q = Kp // 128
        d_best = 1
        for d in range(1, q + 1):
            if q % d == 0 and 128 * d <= tile_k:
                d_best = d
        tile_k = 128 * d_best

    grid = (pl.cdiv(M, tile_m), pl.cdiv(dim_out, tile_n), Kp // tile_k)

    x2d = x.reshape(M, dim_in)
    w2d = weight
    if Kp != dim_in:  # only K ever needs zero-padding (correctness of the reduction)
        x2d = jnp.pad(x2d, ((0, 0), (0, Kp - dim_in)))
        w2d = jnp.pad(w2d, ((0, Kp - dim_in), (0, 0)))
    b2d = bias.reshape(1, dim_out)

    cost = pl.CostEstimate(
        flops=2 * M * dim_in * dim_out,
        transcendentals=M * dim_out,
        bytes_accessed=(M * dim_in) * x_isz
        + (dim_in * dim_out + dim_out) * w_isz
        + (M * dim_out) * x_isz,
    )

    # Double-buffered VMEM footprint estimate; defaults (~12 MiB f32) stay under the
    # 32 MiB scoped default everywhere and well under v7x's 64 MiB physical VMEM.
    vmem_est = (
        2 * (tile_m * tile_k * x_isz + tile_k * tile_n * w_isz + tile_n * w_isz)
        + 2 * tile_m * tile_n * x_isz
        + tile_m * tile_n * 4
    )
    vmem_limit = int(min(max(32 * 1024 * 1024, vmem_est * 3 // 2), 64 * 1024 * 1024))

    kernel = functools.partial(_approx_gelu_proj_kernel, cast_to_bf16=cast_to_bf16)

    out2d = pl.pallas_call(
        kernel,
        out_shape=jax.ShapeDtypeStruct((M, dim_out), x.dtype),
        grid_spec=pltpu.PrefetchScalarGridSpec(
            num_scalar_prefetch=0,
            grid=grid,
            in_specs=[
                pl.BlockSpec((tile_m, tile_k), lambda i, j, k: (i, k)),
                pl.BlockSpec((tile_k, tile_n), lambda i, j, k: (k, j)),
                pl.BlockSpec((1, tile_n), lambda i, j, k: (0, j)),
            ],
            out_specs=pl.BlockSpec((tile_m, tile_n), lambda i, j, k: (i, j)),
            scratch_shapes=[pltpu.VMEM((tile_m, tile_n), jnp.float32)],
        ),
        compiler_params=pltpu.CompilerParams(
            dimension_semantics=("parallel", "parallel", "arbitrary"),
            vmem_limit_bytes=vmem_limit,
        ),
        cost_estimate=cost,
    )(x2d, w2d, b2d)

    return out2d.reshape(B, S, dim_out)


def _reference(x, weight, bias):
    y = jnp.einsum("bsi,io->bso", x, weight) + bias
    return y * jax.nn.sigmoid(1.702 * y)


if __name__ == "__main__":
    key = jax.random.PRNGKey(0)
    k_x, k_w, k_b = jax.random.split(key, 3)

    batch, seq, dim_in, dim_out = 2, 8, 32, 32

    x = jax.random.normal(k_x, (batch, seq, dim_in), dtype=jnp.float32)
    # Deterministic Linear params (weight stored as (dim_in, dim_out) = torch weight.T)
    bound = 1.0 / (dim_in ** 0.5)
    weight = jax.random.uniform(
        k_w, (dim_in, dim_out), dtype=jnp.float32, minval=-bound, maxval=bound
    )
    bias = jax.random.uniform(
        k_b, (dim_out,), dtype=jnp.float32, minval=-bound, maxval=bound
    )

    out = jax.block_until_ready(approximate_gelu(x, weight, bias))
    ref = _reference(x, weight, bias)
    assert out.shape == (batch, seq, dim_out)
    # Tolerance accounts for the approximate (EUP) reciprocal in the fused sigmoid.
    assert jnp.allclose(out, ref, atol=5e-3, rtol=5e-3), "mismatch vs reference"

    # Non-tile-aligned shapes: exercises partial edge blocks in M and N (no wrapper
    # padding) with a full-extent K block and a multi-tile grid.
    k_x2, k_w2, k_b2 = jax.random.split(jax.random.PRNGKey(1), 3)
    b2, s2, di2, do2 = 3, 100, 96, 200
    x2 = jax.random.normal(k_x2, (b2, s2, di2), dtype=jnp.float32)
    w2 = jax.random.normal(k_w2, (di2, do2), dtype=jnp.float32) * 0.05
    bi2 = jax.random.normal(k_b2, (do2,), dtype=jnp.float32) * 0.05
    out2 = jax.block_until_ready(
        approximate_gelu(x2, w2, bi2, tile_m=128, tile_n=128, tile_k=128)
    )
    ref2 = _reference(x2, w2, bi2)
    assert out2.shape == (b2, s2, do2)
    assert jnp.allclose(out2, ref2, atol=5e-3, rtol=5e-3), "mismatch (edge blocks)"

    # Opt-in bf16 MXU path (f32 accumulation); looser tolerance for bf16 operands.
    k_x3, k_w3, k_b3 = jax.random.split(jax.random.PRNGKey(2), 3)
    b3, s3, di3, do3 = 2, 64, 256, 256
    x3 = jax.random.normal(k_x3, (b3, s3, di3), dtype=jnp.float32)
    w3 = jax.random.normal(k_w3, (di3, do3), dtype=jnp.float32) * 0.05
    bi3 = jax.random.normal(k_b3, (do3,), dtype=jnp.float32) * 0.05
    out3 = jax.block_until_ready(approximate_gelu(x3, w3, bi3, cast_to_bf16=True))
    ref3 = _reference(x3, w3, bi3)
    assert jnp.allclose(out3, ref3, atol=5e-2, rtol=5e-2), "mismatch (bf16 path)"

    print("KERNEL_OK")
</pallas_src>

<mosaic_0001>
module attributes {stable_mosaic.version = 11 : i64} {
  func.func @_approx_gelu_proj_kernel(%arg0: i32, %arg1: i32, %arg2: i32, %arg3: memref<8x32xf32, #tpu.memory_space<vmem>>, %arg4: memref<32x32xf32, #tpu.memory_space<vmem>>, %arg5: memref<1x32xf32, #tpu.memory_space<vmem>>, %arg6: memref<8x32xf32, #tpu.memory_space<vmem>>, %arg7: memref<8x32xf32, #tpu.memory_space<vmem>>) attributes {dimension_semantics = [#tpu.dimension_semantics<parallel>, #tpu.dimension_semantics<parallel>, #tpu.dimension_semantics<arbitrary>], iteration_bounds = array<i64: 2, 1, 1>, scalar_prefetch = 0 : i64, scratch_operands = 1 : i64, tpu.core_type = #tpu.core_type<tc>, window_params = [{transform_indices = @transform_0, window_bounds = array<i64: 8, 32>}, {transform_indices = @transform_1, window_bounds = array<i64: 32, 32>}, {transform_indices = @transform_2, window_bounds = array<i64: 1, 32>}, {transform_indices = @transform_3, window_bounds = array<i64: 8, 32>}]} {
    %c0_i32 = arith.constant 0 : i32
    %0 = arith.cmpi eq, %arg2, %c0_i32 : i32
    %1 = arith.extui %0 : i1 to i32
    %c0_i32_0 = arith.constant 0 : i32
    %2 = arith.cmpi ne, %1, %c0_i32_0 : i32
    scf.if %2 {
      %c0_10 = arith.constant 0 : index
      %c0_11 = arith.constant 0 : index
      %12 = vector.load %arg5[%c0_10, %c0_11] : memref<1x32xf32, #tpu.memory_space<vmem>>, vector<1x32xf32>
      %13 = vector.shape_cast %12 : vector<1x32xf32> to vector<1x32xf32>
      %14 = vector.broadcast %13 : vector<1x32xf32> to vector<8x32xf32>
      %c0_12 = arith.constant 0 : index
      %c0_13 = arith.constant 0 : index
      %15 = vector.load %arg7[%c0_12, %c0_13] : memref<8x32xf32, #tpu.memory_space<vmem>>, vector<8x32xf32>
      tpu.vector_store %arg7[%c0_12, %c0_13], %14 {strides = array<i32>} : memref<8x32xf32, #tpu.memory_space<vmem>>, vector<8x32xf32>,
    } else {
    }
    %c0 = arith.constant 0 : index
    %c0_1 = arith.constant 0 : index
    %3 = vector.load %arg3[%c0, %c0_1] : memref<8x32xf32, #tpu.memory_space<vmem>>, vector<8x32xf32>
    %c0_2 = arith.constant 0 : index
    %c0_3 = arith.constant 0 : index
    %4 = vector.load %arg4[%c0_2, %c0_3] : memref<32x32xf32, #tpu.memory_space<vmem>>, vector<32x32xf32>
    %c0_4 = arith.constant 0 : index
    %c0_5 = arith.constant 0 : index
    %5 = vector.load %arg7[%c0_4, %c0_5] : memref<8x32xf32, #tpu.memory_space<vmem>>, vector<8x32xf32>
    %cst = arith.constant dense<0.000000e+00> : vector<8x32xf32>
    %6 = tpu.matmul %3, %4, %cst {dimension_numbers = #tpu.dot_dimension_numbers<[1], [0], [0], [1], [0, 0, 1, 1], [], []>} : vector<8x32xf32>, vector<32x32xf32>, vector<8x32xf32> -> vector<8x32xf32>
    %7 = arith.addf %5, %6 : vector<8x32xf32>
    %c0_6 = arith.constant 0 : index
    %c0_7 = arith.constant 0 : index
    %8 = vector.load %arg7[%c0_6, %c0_7] : memref<8x32xf32, #tpu.memory_space<vmem>>, vector<8x32xf32>
    tpu.vector_store %arg7[%c0_6, %c0_7], %7 {strides = array<i32>} : memref<8x32xf32, #tpu.memory_space<vmem>>, vector<8x32xf32>,
    %c0_i32_8 = arith.constant 0 : i32
    %9 = arith.cmpi eq, %arg2, %c0_i32_8 : i32
    %10 = arith.extui %9 : i1 to i32
    %c0_i32_9 = arith.constant 0 : i32
    %11 = arith.cmpi ne, %10, %c0_i32_9 : i32
    scf.if %11 {
      %c0_10 = arith.constant 0 : index
      %c0_11 = arith.constant 0 : index
      %12 = vector.load %arg7[%c0_10, %c0_11] : memref<8x32xf32, #tpu.memory_space<vmem>>, vector<8x32xf32>
      %cst_12 = arith.constant -1.702000e+00 : f32
      %13 = vector.broadcast %cst_12 : f32 to vector<8x32xf32>
      %14 = arith.mulf %13, %12 : vector<8x32xf32>
      %15 = math.exp %14 : vector<8x32xf32>
      %cst_13 = arith.constant 1.000000e+00 : f32
      %16 = vector.broadcast %cst_13 : f32 to vector<8x32xf32>
      %17 = arith.addf %16, %15 : vector<8x32xf32>
      %18 = tpu.reciprocal %17 {approx = true} : vector<8x32xf32> -> vector<8x32xf32>
      %19 = arith.mulf %12, %18 : vector<8x32xf32>
      %c0_14 = arith.constant 0 : index
      %c0_15 = arith.constant 0 : index
      %20 = vector.load %arg6[%c0_14, %c0_15] : memref<8x32xf32, #tpu.memory_space<vmem>>, vector<8x32xf32>
      tpu.vector_store %arg6[%c0_14, %c0_15], %19 {strides = array<i32>} : memref<8x32xf32, #tpu.memory_space<vmem>>, vector<8x32xf32>,
    } else {
    }
    return
  }
  func.func @transform_0(%arg0: i32, %arg1: i32, %arg2: i32) -> (i32, i32) {
    %c0_i32 = arith.constant 0 : i32
    return %arg0, %arg2 : i32, i32
  }
  func.func @transform_1(%arg0: i32, %arg1: i32, %arg2: i32) -> (i32, i32) {
    %c0_i32 = arith.constant 0 : i32
    return %arg2, %arg1 : i32, i32
  }
  func.func @transform_2(%arg0: i32, %arg1: i32, %arg2: i32) -> (i32, i32) {
    %c0_i32 = arith.constant 0 : i32
    %c0_i32_0 = arith.constant 0 : i32
    return %c0_i32, %arg1 : i32, i32
  }
  func.func @transform_3(%arg0: i32, %arg1: i32, %arg2: i32) -> (i32, i32) {
    %c0_i32 = arith.constant 0 : i32
    return %arg0, %arg1 : i32, i32
  }
}

</mosaic_0001>

<llo_original>
// kernel: tpu_custom_call.1
$region0: #{tpu_custom_call.1}
  #allocation0 [shape = 'u32[]', space=smem, size = 0x4, offset = 0x4, fixed_abs, tag = 'smem constant byte address 0x4 - core index']
  #allocation1 [shape = 'u32[72,128]{1,0:T(1,128)}', space=vmem, size = 0x9000, scoped, tag = 'internal scratch']
  #allocation2 [shape = 'f32[8,32]{1,0:T(8,128)}', space=vmem, size = 0x1000, scoped, tag = 'scratch operand']
  %s0 = inlined_call_operand.hbm [shape: f32[16,32], index: 0, kind: input, shape index: {}]
  %s1 = inlined_call_operand.hbm [shape: f32[32,32], index: 1, kind: input, shape index: {}]
  %s2 = inlined_call_operand.vmem [shape: f32[1,32], index: 2, kind: input, shape index: {}]
  %s3 = inlined_call_operand.hbm [shape: f32[16,32], index: 3, kind: output, shape index: {}]
  %s4 = sld [smem:[#allocation0]]
  $region61: #{tpu_custom_call.1} parent=0
    _
  %s6 = ssub.s32 1, %s4
  %s7 = scalar_select 0, %s6, %s4
  $region1: #{tpu_custom_call.1} parent=0
    #allocation3 [shape = 'u8[8192]{0}', space=vmem, size = 0x2000, scoped, tag = 'input window, operand 0']
    #allocation4 [shape = 's32[2]{0}', space=sflag, size = 0x8, scoped, tag = 'scoped memory for tpu_custom_call.1']
    #allocation5 [shape = 's32[2]{0}', space=sflag, size = 0x8, scoped, tag = 'scoped memory for tpu_custom_call.1']
    #allocation6 [shape = 'u8[16384]{0}', space=vmem, size = 0x4000, scoped, tag = 'input window, operand 1, single buffered']
    #allocation7 [shape = 's32[1]{0}', space=sflag, size = 0x4, scoped, tag = 'scoped memory for tpu_custom_call.1']
    #allocation8 [shape = 'u8[8192]{0}', space=vmem, size = 0x2000, scoped, tag = 'output window, operand 0']
    %8 = vsyncpa [#allocation4], 0
    %s9 = scalar_lea.sflag [#allocation4], 1
    %10 = vsyncpa %s9, 0
    %11 = vsyncpa [#allocation7], 0
    %12 = vsyncpa [#allocation5], 0
    %s13 = scalar_lea.sflag [#allocation5], 1
    %14 = vsyncpa %s13, 0
    loop: start=0, step=1, limit=4
    $region2: #{tpu_custom_call.1} parent=1 // loop_pre_header
      _
    $region3: #{tpu_custom_call.1} parent=1 // loop_header
      %s16 = sphi 0, %s20
      %p17 = scmp.ge.s32.totalorder %s16, 4
      %s23 = sphi 0, %s42
      %s24 = sphi 0, %s38
      %s25 = sphi 0, %s34
      %s26 = sphi 0, %s23
      %s27 = sphi 0, %s24
      %s28 = sphi 0, %s25
      %s29 = sphi 0, %s26
      %s30 = sphi 0, %s27
      %s31 = sphi 0, %s28
      %s47 = sphi 0, %s49
      %s50 = sphi 0, %s47
      %s51 = sphi 0, %s50
      %s67 = sphi 0, %s51
      %s75 = sphi 0, %s77
      %s78 = sphi 0, %s75
      %s79 = sphi 0, %s78
      %s95 = sphi 0, %s79
      %s101 = sphi 0, %s103
      %s104 = sphi 0, %s101
      %s105 = sphi 0, %s104
      %s121 = sphi 0, %s105
      %s129 = sphi 0, %s131
      %s132 = sphi 0, %s129
      %s133 = sphi 0, %s132
      %s149 = sphi 0, %s133
    $region4: #{tpu_custom_call.1} parent=1 // loop_header_branch
      %19 = sbr.rel (%p17) target = $region8
    $region5: #{tpu_custom_call.1} parent=1 // loop_body
      %s21 = ssub.s32 %s16, 1
      %s22 = ssub.s32 %s16, 2
      %s32 = sadd.s32 1, %s25
      %p33 = scmp.ge.s32.totalorder %s32, 1
      %s34 = scalar_select %p33, 0, %s32
      %s35 = sadd.s32 1, %s24
      %s36 = scalar_select %p33, %s35, %s24
      %p37 = scmp.ge.s32.totalorder %s36, 1
      %s38 = scalar_select %p37, 0, %s36
      %s39 = sadd.s32 1, %s23
      %s40 = scalar_select %p37, %s39, %s23
      %p41 = scmp.ge.s32.totalorder %s40, 2
      %s42 = scalar_select %p41, 0, %s40
      %s43 = ssub.s32 %s23, %s42
      %s44 = ssub.s32 %s25, %s34
      %s45 = sor.u32 %s43, %s44
      %p46 = scmp.eq.s32.totalorder %s45, 0
      %s48 = sadd.s32 %s47, 1
      %s49 = scalar_select %p46, %s47, %s48
      %p52 = pneg %p46
      %p53 = scmp.eq.s32.totalorder %s16, 1
      %p54 = por %p52, %p53
      %p55 = scmp.ne.s32.totalorder %s47, %s50
      %p56 = scmp.eq.s32.totalorder %s16, 0
      %p57 = por %p55, %p56
      %p58 = scmp.ne.s32.totalorder %s47, %s50
      %p59 = scmp.eq.s32.totalorder %s21, 1
      %p60 = por %p58, %p59
      %p61 = scmp.ne.s32.totalorder %s50, %s51
      %p62 = scmp.eq.s32.totalorder %s21, 0
      %p63 = por %p61, %p62
      %p64 = scmp.ne.s32.totalorder %s50, %s51
      %p65 = scmp.eq.s32.totalorder %s22, 1
      %p66 = por %p64, %p65
      %p68 = scmp.ne.s32.totalorder %s51, %s67
      %p69 = scmp.eq.s32.totalorder %s22, 0
      %p70 = por %p68, %p69
      %s71 = ssub.s32 %s25, %s34
      %s72 = ssub.s32 %s24, %s38
      %s73 = sor.u32 %s71, %s72
      %p74 = scmp.eq.s32.totalorder %s73, 0
      %s76 = sadd.s32 %s75, 1
      %s77 = scalar_select %p74, %s75, %s76
      %p80 = pneg %p74
      %p81 = scmp.eq.s32.totalorder %s16, 1
      %p82 = por %p80, %p81
      %p83 = scmp.ne.s32.totalorder %s75, %s78
      %p84 = scmp.eq.s32.totalorder %s16, 0
      %p85 = por %p83, %p84
      %p86 = scmp.ne.s32.totalorder %s75, %s78
      %p87 = scmp.eq.s32.totalorder %s21, 1
      %p88 = por %p86, %p87
      %p89 = scmp.ne.s32.totalorder %s78, %s79
      %p90 = scmp.eq.s32.totalorder %s21, 0
      %p91 = por %p89, %p90
      %p92 = scmp.ne.s32.totalorder %s78, %s79
      %p93 = scmp.eq.s32.totalorder %s22, 1
      %p94 = por %p92, %p93
      %p96 = scmp.ne.s32.totalorder %s79, %s95
      %p97 = scmp.eq.s32.totalorder %s22, 0
      %p98 = por %p96, %p97
      %s99 = ssub.s32 %s24, %s38
      %p100 = scmp.eq.s32.totalorder %s99, 0
      %s102 = sadd.s32 %s101, 1
      %s103 = scalar_select %p100, %s101, %s102
      %p106 = pneg %p100
      %p107 = scmp.eq.s32.totalorder %s16, 1
      %p108 = por %p106, %p107
      %p109 = scmp.ne.s32.totalorder %s101, %s104
      %p110 = scmp.eq.s32.totalorder %s16, 0
      %p111 = por %p109, %p110
      %p112 = scmp.ne.s32.totalorder %s101, %s104
      %p113 = scmp.eq.s32.totalorder %s21, 1
      %p114 = por %p112, %p113
      %p115 = scmp.ne.s32.totalorder %s104, %s105
      %p116 = scmp.eq.s32.totalorder %s21, 0
      %p117 = por %p115, %p116
      %p118 = scmp.ne.s32.totalorder %s104, %s105
      %p119 = scmp.eq.s32.totalorder %s22, 1
      %p120 = por %p118, %p119
      %p122 = scmp.ne.s32.totalorder %s105, %s121
      %p123 = scmp.eq.s32.totalorder %s22, 0
      %p124 = por %p122, %p123
      %s125 = ssub.s32 %s23, %s42
      %s126 = ssub.s32 %s24, %s38
      %s127 = sor.u32 %s125, %s126
      %p128 = scmp.eq.s32.totalorder %s127, 0
      %s130 = sadd.s32 %s129, 1
      %s131 = scalar_select %p128, %s129, %s130
      %p134 = pneg %p128
      %p135 = scmp.eq.s32.totalorder %s16, 1
      %p136 = por %p134, %p135
      %p137 = scmp.ne.s32.totalorder %s129, %s132
      %p138 = scmp.eq.s32.totalorder %s16, 0
      %p139 = por %p137, %p138
      %p140 = scmp.ne.s32.totalorder %s129, %s132
      %p141 = scmp.eq.s32.totalorder %s21, 1
      %p142 = por %p140, %p141
      %p143 = scmp.ne.s32.totalorder %s132, %s133
      %p144 = scmp.eq.s32.totalorder %s21, 0
      %p145 = por %p143, %p144
      %p146 = scmp.ne.s32.totalorder %s132, %s133
      %p147 = scmp.eq.s32.totalorder %s22, 1
      %p148 = por %p146, %p147
      %p150 = scmp.ne.s32.totalorder %s133, %s149
      %p151 = scmp.eq.s32.totalorder %s22, 0
      %p152 = por %p150, %p151
      %p153 = scmp.le.s32.totalorder 1, %s16
      %p154 = scmp.lt.s32.totalorder %s16, 3
      %p155 = pnand %p153, %p154
      %p156 = pneg %p155
      // Predicated region
      $region9: #{tpu_custom_call.1} parent=5 // pred_check
        _
      $region10: #{tpu_custom_call.1} parent=5 // pred_check_branch
        %158 = sbr.rel (%p155) target = $region12
      $region11: #{tpu_custom_call.1} parent=5 // pred_region
        %s159 = ssub.s32 %s16, 1
        // Predicated region
        $region13: #{tpu_custom_call.1} parent=11 // pred_check
          %p160 = pneg %p91
        $region14: #{tpu_custom_call.1} parent=11 // pred_check_branch
          %162 = sbr.rel (%p160) target = $region16
        $region15: #{tpu_custom_call.1} parent=11 // pred_region
          %s163 = smul.u32 4, %s28
          %165 = vsyncadd [#allocation7], 0
          %s166 = sadd.s32 %s27, %s163
          %s167 = smul.addr %s166, 8
          %s168 = scalar_lea.hbm %s1, %s167
          %s169 = sshll.u32 %s168, 4
          %s170 = int_to_ptr.hbm [resolvable:$true] %s169
          %s171 = sshll.u32 [#allocation6], 4
          %s172 = int_to_ptr.vmem [resolvable:$true] %s171
          %177 = dma.hbm_to_vmem [thread:$0]  %s170, 512, %s172, [#allocation7], 128, 128, 8
        $region16: #{tpu_custom_call.1} parent=11 // pred_fallthru
          _
        // Predicated region
        $region17: #{tpu_custom_call.1} parent=11 // pred_check
          %p178 = pneg %p117
        $region18: #{tpu_custom_call.1} parent=11 // pred_check_branch
          %180 = sbr.rel (%p178) target = $region20
        $region19: #{tpu_custom_call.1} parent=11 // pred_region
          %p181 = scmp.lt.s32.totalorder %s27, 0
          %s182 = scalar_select %p181, %s27, 0
          %s183 = scalar_lea.vmem %s2, %s182
        $region20: #{tpu_custom_call.1} parent=11 // pred_fallthru
          _
      $region12: #{tpu_custom_call.1} parent=5 // pred_fallthru
        _
      %p184 = scmp.lt.s32.totalorder %s16, 2
      // Predicated region
      $region21: #{tpu_custom_call.1} parent=5 // pred_check
        %p185 = pneg %p184
      $region22: #{tpu_custom_call.1} parent=5 // pred_check_branch
        %187 = sbr.rel (%p185) target = $region24
      $region23: #{tpu_custom_call.1} parent=5 // pred_region
        // Predicated region
        $region25: #{tpu_custom_call.1} parent=23 // pred_check
          %p188 = pneg %p57
        $region26: #{tpu_custom_call.1} parent=23 // pred_check_branch
          %190 = sbr.rel (%p188) target = $region28
        $region27: #{tpu_custom_call.1} parent=23 // pred_region
          %s191 = sand.u32 %s47, 1
          %s192 = scalar_lea.sflag [#allocation4], %s191
          %s193 = sand.u32 %s47, 1
          %s194 = smul.addr %s193, 8
          %s195 = scalar_lea.vmem [#allocation3], %s194
          %197 = vsyncadd %s192, 0
          %s198 = sadd.s32 %s25, %s23
          %s199 = smul.addr %s198, 8
          %s200 = scalar_lea.hbm %s0, %s199
          %s202 = sshll.u32 %s200, 4
          %s203 = int_to_ptr.hbm [resolvable:$true] %s202
          %s204 = sshll.u32 %s195, 4
          %s205 = int_to_ptr.vmem [resolvable:$true] %s204
          %207 = dma.hbm_to_vmem [thread:$0]  %s203, 128, %s205, %s192
        $region28: #{tpu_custom_call.1} parent=23 // pred_fallthru
          _
      $region24: #{tpu_custom_call.1} parent=5 // pred_fallthru
        _
      %p208 = scmp.le.s32.totalorder 1, %s16
      %p209 = scmp.lt.s32.totalorder %s16, 3
      %p210 = pnand %p208, %p209
      %p211 = pneg %p210
      // Predicated region
      $region29: #{tpu_custom_call.1} parent=5 // pred_check
        _
      $region30: #{tpu_custom_call.1} parent=5 // pred_check_branch
        %213 = sbr.rel (%p210) target = $region32
      $region31: #{tpu_custom_call.1} parent=5 // pred_region
        %s214 = ssub.s32 %s16, 1
        %s215 = sand.u32 %s50, 1
        %s216 = scalar_lea.sflag [#allocation4], %s215
        %s217 = sand.u32 %s50, 1
        %s218 = smul.addr %s217, 8
        %s219 = scalar_lea.vmem [#allocation3], %s218
        // Predicated region
        $region33: #{tpu_custom_call.1} parent=31 // pred_check
          %p220 = pneg %p63
        $region34: #{tpu_custom_call.1} parent=31 // pred_check_branch
          %222 = sbr.rel (%p220) target = $region36
        $region35: #{tpu_custom_call.1} parent=31 // pred_region
          %224 = dma.done %s216, 128
        $region36: #{tpu_custom_call.1} parent=31 // pred_fallthru
          _
        // Predicated region
        $region37: #{tpu_custom_call.1} parent=31 // pred_check
          %p225 = pneg %p91
        $region38: #{tpu_custom_call.1} parent=31 // pred_check_branch
          %227 = sbr.rel (%p225) target = $region40
        $region39: #{tpu_custom_call.1} parent=31 // pred_region
          %229 = dma.done [#allocation7], 512
        $region40: #{tpu_custom_call.1} parent=31 // pred_fallthru
          _
        %s230 = sand.u32 %s50, 1
        %s231 = scalar_lea.sflag [#allocation4], %s230
        %s232 = sand.u32 %s50, 1
        %s233 = smul.addr %s232, 8
        %s234 = scalar_lea.vmem [#allocation3], %s233
        %p235 = pneg %p63
        %p236 = pneg %p60
        %p237 = pneg %p91
        %p238 = pneg %p88
        %p239 = scmp.lt.s32.totalorder %s27, 0
        %s240 = scalar_select %p239, %s27, 0
        %s241 = scalar_lea.vmem %s2, %s240
        %p242 = pneg %p117
        %p243 = pneg %p114
        %p244 = pneg %p145
        %p245 = pneg %p142
        %s246 = sand.u32 %s132, 1
        %s247 = scalar_lea.sflag [#allocation5], %s246
        %s248 = sand.u32 %s132, 1
        %s249 = smul.addr %s248, 8
        %s250 = scalar_lea.vmem [#allocation8], %s249
        %s251 = smul.u32 4, %s28
        %p252 = scmp.lt.s32.totalorder %s27, 0
        %s253 = scalar_select %p252, %s27, 0
        %s254 = scalar_lea.vmem %s2, %s253
        %p255 = scmp.eq.s32.totalorder %s28, 0
        // Predicated region
        $region41: #{tpu_custom_call.1} parent=31 // pred_check
          %p256 = pneg %p255
        $region42: #{tpu_custom_call.1} parent=31 // pred_check_branch
          %258 = sbr.rel (%p256) target = $region44
        $region43: #{tpu_custom_call.1} parent=31 // pred_region
          %v259 = vld [vmem:[%s254] sm:$0x1]
          %v261 = vperm.slane %v259, 0
          %vm263 = vcmask 261120
          %264 = vst.msk [vmem:[#allocation2] sm:$0xff] %vm263, %v261
        $region44: #{tpu_custom_call.1} parent=31 // pred_fallthru
          _
        %v265 = vld [vmem:[%s219] sm:$0xff]
        %v266 = vld [vmem:[#allocation6] sm:$0xff]
        %v267 = vld [vmem:[#allocation6 + $0x8] sm:$0xff]
        %v268 = vld [vmem:[#allocation6 + $0x10] sm:$0xff]
        %v269 = vld [vmem:[#allocation6 + $0x18] sm:$0xff]
        %v270 = vld [vmem:[#allocation2] sm:$0xff]
        %vm271 = vcmask 261120
        %v273 = vsel %vm271, %v265, 0
        %275 = vmatpush.msra.mxu0 0.0
        %276 = vmatpush.msra.mxu0 0.0
        %277 = vmatpush.msra.mxu0 0.0
        %278 = vmatpush.msra.mxu0 0.0
        %279 = vmatpush.msra.mxu0 0.0
        %280 = vmatpush.msra.mxu0 0.0
        %281 = vmatpush.msra.mxu0 0.0
        %282 = vmatpush.msra.mxu0 0.0
        %283 = vmatpush.msra.mxu0 0.0
        %284 = vmatpush.msra.mxu0 0.0
        %285 = vmatpush.msra.mxu0 0.0
        %286 = vmatpush.msra.mxu0 0.0
        %287 = vmatpush.msra.mxu0 %v269
        %288 = vmatpush.msra.mxu0 %v268
        %289 = vmatpush.msra.mxu0 %v267
        %290 = vmatpush.msra.mxu0 %v266
        %291 = vmatmul.f32.gmra.mxu0 %v273
        %v292 = vpop.f32.mrf.mxu0
        %v293 = vadd.f32 0.0, %v292
        %294 = vdwg.mxu0
        %v295 = vadd.f32 %v270, %v293
        %296 = vst.msk [vmem:[#allocation2] sm:$0xff] %vm271, %v295
        // Predicated region
        $region45: #{tpu_custom_call.1} parent=31 // pred_check
          %p297 = pneg %p255
        $region46: #{tpu_custom_call.1} parent=31 // pred_check_branch
          %299 = sbr.rel (%p297) target = $region48
        $region47: #{tpu_custom_call.1} parent=31 // pred_region
          %v300 = vld [vmem:[#allocation2] sm:$0xff]
          %v301 = vmul.f32 %v300, -1.702
          %v302 = vmul.f32 %v301, 1.442695
          %v303 = vpow.pop %v302
          %v304 = vadd.f32 %v303, 1.0
          %v305 = vrcp.pop %v304
          %v306 = vmul.f32 %v300, %v305
          %307 = vst.msk [vmem:[%s250] sm:$0xff] %vm271, %v306
        $region48: #{tpu_custom_call.1} parent=31 // pred_fallthru
          _
        %s308 = sand.u32 %s132, 1
        %s309 = scalar_lea.sflag [#allocation5], %s308
        %s310 = sand.u32 %s132, 1
        %s311 = smul.addr %s310, 8
        %s312 = scalar_lea.vmem [#allocation8], %s311
        // Predicated region
        $region49: #{tpu_custom_call.1} parent=31 // pred_check
          %p313 = pneg %p142
        $region50: #{tpu_custom_call.1} parent=31 // pred_check_branch
          %315 = sbr.rel (%p313) target = $region52
        $region51: #{tpu_custom_call.1} parent=31 // pred_region
          %317 = vsyncadd %s309, 0
          %s318 = sadd.s32 %s27, %s26
          %s319 = smul.addr %s318, 8
          %s320 = scalar_lea.hbm %s3, %s319
          %s322 = sshll.u32 %s312, 4
          %s323 = int_to_ptr.vmem [resolvable:$true] %s322
          %s324 = sshll.u32 %s320, 4
          %s325 = int_to_ptr.hbm [resolvable:$true] %s324
          %327 = dma.vmem_to_hbm [thread:$0]  %s323, 128, %s325, %s309
        $region52: #{tpu_custom_call.1} parent=31 // pred_fallthru
          _
      $region32: #{tpu_custom_call.1} parent=5 // pred_fallthru
        _
      %p328 = scmp.le.s32.totalorder 2, %s16
      // Predicated region
      $region53: #{tpu_custom_call.1} parent=5 // pred_check
        %p329 = pneg %p328
      $region54: #{tpu_custom_call.1} parent=5 // pred_check_branch
        %331 = sbr.rel (%p329) target = $region56
      $region55: #{tpu_custom_call.1} parent=5 // pred_region
        %s332 = ssub.s32 %s16, 2
        // Predicated region
        $region57: #{tpu_custom_call.1} parent=55 // pred_check
          %p333 = pneg %p148
        $region58: #{tpu_custom_call.1} parent=55 // pred_check_branch
          %335 = sbr.rel (%p333) target = $region60
        $region59: #{tpu_custom_call.1} parent=55 // pred_region
          %s336 = sand.u32 %s133, 1
          %s337 = scalar_lea.sflag [#allocation5], %s336
          %s338 = sand.u32 %s133, 1
          %s339 = smul.addr %s338, 8
          %s340 = scalar_lea.vmem [#allocation8], %s339
          %342 = dma.done %s337, 128
        $region60: #{tpu_custom_call.1} parent=55 // pred_fallthru
          _
      $region56: #{tpu_custom_call.1} parent=5 // pred_fallthru
        _
    $region6: #{tpu_custom_call.1} parent=1 // loop_footer
      %s20 = sadd.s32 1, %s16
    $region7: #{tpu_custom_call.1} parent=1 // loop_footer_branch
      %15 = sbr.rel target = $region3
    $region8: #{tpu_custom_call.1} parent=1 // loop_exit
      _
    %343 = vsyncpa [#allocation4], 1
    %s344 = scalar_lea.sflag [#allocation4], 1
    %345 = vsyncpa %s344, 1
    %346 = vsyncpa [#allocation7], 1
    %347 = vsyncpa [#allocation5], 1
    %s348 = scalar_lea.sflag [#allocation5], 1
    %349 = vsyncpa %s348, 1

</llo_original>
